<compile_context>
chip_gen: v5e
topology: v5e:2x2
jax: 0.10.0
libtpu: 0.0.40
codegen_flags: <defaults>
</compile_context>

<pallas_src>
import jax
import jax.numpy as jnp
import numpy as np
from jax.experimental import pallas as pl
from jax.experimental.pallas import tpu as pltpu

INPUT_SIZE = 1     # features per RNN step (row-sliced in the PyTorch loop)
HIDDEN_SIZE = 32
OUTPUT_SIZE = 16
SEQ_LEN = 8        # len(input) == number of rows == number of RNN steps

assert OUTPUT_SIZE <= HIDDEN_SIZE, "packing assumes OUTPUT_SIZE <= HIDDEN_SIZE"


def _round8(n):
    return ((n + 7) // 8) * 8


# Packed-parameter row offsets (lane width = HIDDEN_SIZE, 8-aligned blocks).
OFF_WIH = 0                                  # (INPUT_SIZE, H)  = w_ih^T
OFF_BIAS = OFF_WIH + INPUT_SIZE              # (1, H)           = b_ih + b_hh
OFF_WHH = _round8(OFF_BIAS + 1)              # (H, H)           = w_hh^T
OFF_WOUT = OFF_WHH + HIDDEN_SIZE             # (H, H)           = w_out^T, 0-padded lanes
OFF_BOUT = OFF_WOUT + HIDDEN_SIZE            # (1, H)           = b_out, 0-padded lanes
PACKED_ROWS = _round8(OFF_BOUT + 1)          # -> 80 rows x 32 lanes = 10 KiB


def rnn_kernel(x_ref, h0_ref, p_ref, out_ref, ih_ref):
    """Whole T-step recurrence fused into ONE kernel invocation.

    h_t = tanh(x_t @ W_ih^T + (b_ih + b_hh) + h_{t-1} @ W_hh^T)
    out = h_T @ W_out^T + b_out   (output_layer fused on the final step)
    """
    # Static slices of the single packed parameter buffer (one DMA at entry).
    wih = p_ref[OFF_WIH:OFF_WIH + INPUT_SIZE, :]        # (input_size, H)
    bias = p_ref[OFF_BIAS:OFF_BIAS + 1, :]              # (1, H), biases pre-folded
    whh = p_ref[OFF_WHH:OFF_WHH + HIDDEN_SIZE, :]       # (H, H)
    wout = p_ref[OFF_WOUT:OFF_WOUT + HIDDEN_SIZE, :]    # (H, H), lanes >= OUTPUT_SIZE are 0
    bout = p_ref[OFF_BOUT:OFF_BOUT + 1, :]              # (1, H), lanes >= OUTPUT_SIZE are 0

    # Input projection + biases: hoisted entirely off the serial chain.
    x = x_ref[...]                                      # (T, input_size)
    if x_ref.shape[1] == 1:
        ih_all = x * wih + bias                         # broadcast path (input_size == 1)
    else:
        ih_all = jnp.dot(x, wih, preferred_element_type=jnp.float32) + bias
    ih_ref[...] = ih_all                                # stage in VMEM scratch

    h = h0_ref[...]                                     # (1, H)

    # Statically unrolled serial recurrence; per-step critical path is
    # dot + one-row vld + add + tanh.  W_hh loaded once, reused every step.
    for t in range(SEQ_LEN):
        hh = jnp.dot(h, whh, preferred_element_type=jnp.float32)   # (1, H)
        h = jnp.tanh(ih_ref[t:t + 1, :] + hh)

    y = jnp.dot(h, wout, preferred_element_type=jnp.float32) + bout  # (1, H)
    out_ref[...] = y[:, :OUTPUT_SIZE].astype(out_ref.dtype)


def rnn_forward(x, hidden, packed_params):
    """Returns (output, hidden) like RNN.forward; `hidden` is returned
    unchanged, exactly as in the PyTorch module (which discards h_n)."""
    vmem = pl.BlockSpec(memory_space=pltpu.MemorySpace.VMEM)
    flops = (2 * SEQ_LEN * INPUT_SIZE * HIDDEN_SIZE          # input projection
             + 2 * SEQ_LEN * HIDDEN_SIZE * HIDDEN_SIZE       # recurrence
             + 2 * HIDDEN_SIZE * OUTPUT_SIZE)                # output layer
    bytes_accessed = 4 * (x.size + hidden.size + packed_params.size + OUTPUT_SIZE)
    out = pl.pallas_call(
        rnn_kernel,
        out_shape=jax.ShapeDtypeStruct((1, OUTPUT_SIZE), jnp.float32),
        in_specs=[vmem, vmem, vmem],          # all operands whole-resident in VMEM
        out_specs=vmem,
        scratch_shapes=[pltpu.VMEM((SEQ_LEN, HIDDEN_SIZE), jnp.float32)],
        cost_estimate=pl.CostEstimate(
            flops=flops,
            transcendentals=SEQ_LEN * HIDDEN_SIZE,
            bytes_accessed=bytes_accessed),
    )(x, hidden, packed_params)
    return out, hidden


def init_params(key):
    """Deterministic params with PyTorch-style uniform init (raw layout)."""
    k = jax.random.split(key, 6)
    s = 1.0 / np.sqrt(HIDDEN_SIZE)
    w_ih = jax.random.uniform(k[0], (HIDDEN_SIZE, INPUT_SIZE), jnp.float32, -s, s)
    w_hh = jax.random.uniform(k[1], (HIDDEN_SIZE, HIDDEN_SIZE), jnp.float32, -s, s)
    b_ih = jax.random.uniform(k[2], (HIDDEN_SIZE,), jnp.float32, -s, s)
    b_hh = jax.random.uniform(k[3], (HIDDEN_SIZE,), jnp.float32, -s, s)
    w_out = jax.random.uniform(k[4], (OUTPUT_SIZE, HIDDEN_SIZE), jnp.float32, -s, s)
    b_out = jax.random.uniform(k[5], (OUTPUT_SIZE,), jnp.float32, -s, s)
    return w_ih, w_hh, b_ih, b_hh, w_out, b_out


def pack_params(w_ih, w_hh, b_ih, b_hh, w_out, b_out):
    """Fold b_ih+b_hh and pack every parameter into ONE contiguous f32 buffer
    so the kernel entry is a single HBM->VMEM DMA instead of eight."""
    p = np.zeros((PACKED_ROWS, HIDDEN_SIZE), np.float32)
    p[OFF_WIH:OFF_WIH + INPUT_SIZE, :] = np.asarray(w_ih).T
    p[OFF_BIAS, :] = np.asarray(b_ih) + np.asarray(b_hh)
    p[OFF_WHH:OFF_WHH + HIDDEN_SIZE, :] = np.asarray(w_hh).T
    p[OFF_WOUT:OFF_WOUT + HIDDEN_SIZE, :OUTPUT_SIZE] = np.asarray(w_out).T
    p[OFF_BOUT, :OUTPUT_SIZE] = np.asarray(b_out)
    return jnp.asarray(p)


if __name__ == "__main__":
    key = jax.random.PRNGKey(0)
    kx, kp = jax.random.split(key)

    x = jax.random.normal(kx, (SEQ_LEN, INPUT_SIZE), jnp.float32)   # `input`
    hidden = jnp.zeros((1, HIDDEN_SIZE), jnp.float32)               # init_hidden(1)
    raw = init_params(kp)
    packed = pack_params(*raw)

    out, hid = rnn_forward(x, hidden, packed)
    out = jax.block_until_ready(out)

    # Pure-JAX reference of the exact PyTorch recurrence (sanity check).
    w_ih, w_hh, b_ih, b_hh, w_out, b_out = raw
    h = hidden
    for t in range(SEQ_LEN):
        xt = x[t:t + 1, :]
        h = jnp.tanh(xt @ w_ih.T + b_ih + h @ w_hh.T + b_hh)
    ref = h @ w_out.T + b_out

    assert out.shape == (1, OUTPUT_SIZE)
    np.testing.assert_allclose(np.asarray(out), np.asarray(ref),
                               rtol=1e-3, atol=1e-3)
    assert np.array_equal(np.asarray(hid), np.asarray(hidden))
    print("KERNEL_OK")
</pallas_src>

<mosaic_0001>
module attributes {stable_mosaic.version = 11 : i64} {
  func.func @rnn_kernel(%arg0: memref<8x1xf32, #tpu.memory_space<vmem>>, %arg1: memref<1x32xf32, #tpu.memory_space<vmem>>, %arg2: memref<80x32xf32, #tpu.memory_space<vmem>>, %arg3: memref<1x16xf32, #tpu.memory_space<vmem>>, %arg4: memref<8x32xf32, #tpu.memory_space<vmem>>) attributes {dimension_semantics = [], scalar_prefetch = 0 : i64, scratch_operands = 1 : i64, tpu.core_type = #tpu.core_type<tc>} {
    %c0 = arith.constant 0 : index
    %c0_0 = arith.constant 0 : index
    %0 = vector.load %arg2[%c0, %c0_0] : memref<80x32xf32, #tpu.memory_space<vmem>>, vector<1x32xf32>
    %c1 = arith.constant 1 : index
    %c0_1 = arith.constant 0 : index
    %1 = vector.load %arg2[%c1, %c0_1] : memref<80x32xf32, #tpu.memory_space<vmem>>, vector<1x32xf32>
    %c8 = arith.constant 8 : index
    %c0_2 = arith.constant 0 : index
    %2 = vector.load %arg2[%c8, %c0_2] : memref<80x32xf32, #tpu.memory_space<vmem>>, vector<32x32xf32>
    %c40 = arith.constant 40 : index
    %c0_3 = arith.constant 0 : index
    %3 = vector.load %arg2[%c40, %c0_3] : memref<80x32xf32, #tpu.memory_space<vmem>>, vector<32x32xf32>
    %c72 = arith.constant 72 : index
    %c0_4 = arith.constant 0 : index
    %4 = vector.load %arg2[%c72, %c0_4] : memref<80x32xf32, #tpu.memory_space<vmem>>, vector<1x32xf32>
    %c0_5 = arith.constant 0 : index
    %c0_6 = arith.constant 0 : index
    %5 = vector.load %arg0[%c0_5, %c0_6] : memref<8x1xf32, #tpu.memory_space<vmem>>, vector<8x1xf32>
    %6 = vector.broadcast %5 : vector<8x1xf32> to vector<8x32xf32>
    %7 = vector.broadcast %0 : vector<1x32xf32> to vector<8x32xf32>
    %8 = arith.mulf %6, %7 : vector<8x32xf32>
    %9 = vector.broadcast %1 : vector<1x32xf32> to vector<8x32xf32>
    %10 = arith.addf %8, %9 : vector<8x32xf32>
    %c0_7 = arith.constant 0 : index
    %c0_8 = arith.constant 0 : index
    %11 = vector.load %arg4[%c0_7, %c0_8] : memref<8x32xf32, #tpu.memory_space<vmem>>, vector<8x32xf32>
    tpu.vector_store %arg4[%c0_7, %c0_8], %10 {strides = array<i32>} : memref<8x32xf32, #tpu.memory_space<vmem>>, vector<8x32xf32>,
    %c0_9 = arith.constant 0 : index
    %c0_10 = arith.constant 0 : index
    %12 = vector.load %arg1[%c0_9, %c0_10] : memref<1x32xf32, #tpu.memory_space<vmem>>, vector<1x32xf32>
    %cst = arith.constant dense<0.000000e+00> : vector<1x32xf32>
    %13 = tpu.matmul %12, %2, %cst {dimension_numbers = #tpu.dot_dimension_numbers<[1], [0], [0], [1], [0, 0, 1, 1], [], []>} : vector<1x32xf32>, vector<32x32xf32>, vector<1x32xf32> -> vector<1x32xf32>
    %c0_11 = arith.constant 0 : index
    %c0_12 = arith.constant 0 : index
    %14 = vector.load %arg4[%c0_11, %c0_12] : memref<8x32xf32, #tpu.memory_space<vmem>>, vector<1x32xf32>
    %15 = arith.addf %14, %13 : vector<1x32xf32>
    %16 = math.tanh %15 : vector<1x32xf32>
    %cst_13 = arith.constant dense<0.000000e+00> : vector<1x32xf32>
    %17 = tpu.matmul %16, %2, %cst_13 {dimension_numbers = #tpu.dot_dimension_numbers<[1], [0], [0], [1], [0, 0, 1, 1], [], []>} : vector<1x32xf32>, vector<32x32xf32>, vector<1x32xf32> -> vector<1x32xf32>
    %c1_14 = arith.constant 1 : index
    %c0_15 = arith.constant 0 : index
    %18 = vector.load %arg4[%c1_14, %c0_15] : memref<8x32xf32, #tpu.memory_space<vmem>>, vector<1x32xf32>
    %19 = arith.addf %18, %17 : vector<1x32xf32>
    %20 = math.tanh %19 : vector<1x32xf32>
    %cst_16 = arith.constant dense<0.000000e+00> : vector<1x32xf32>
    %21 = tpu.matmul %20, %2, %cst_16 {dimension_numbers = #tpu.dot_dimension_numbers<[1], [0], [0], [1], [0, 0, 1, 1], [], []>} : vector<1x32xf32>, vector<32x32xf32>, vector<1x32xf32> -> vector<1x32xf32>
    %c2 = arith.constant 2 : index
    %c0_17 = arith.constant 0 : index
    %22 = vector.load %arg4[%c2, %c0_17] : memref<8x32xf32, #tpu.memory_space<vmem>>, vector<1x32xf32>
    %23 = arith.addf %22, %21 : vector<1x32xf32>
    %24 = math.tanh %23 : vector<1x32xf32>
    %cst_18 = arith.constant dense<0.000000e+00> : vector<1x32xf32>
    %25 = tpu.matmul %24, %2, %cst_18 {dimension_numbers = #tpu.dot_dimension_numbers<[1], [0], [0], [1], [0, 0, 1, 1], [], []>} : vector<1x32xf32>, vector<32x32xf32>, vector<1x32xf32> -> vector<1x32xf32>
    %c3 = arith.constant 3 : index
    %c0_19 = arith.constant 0 : index
    %26 = vector.load %arg4[%c3, %c0_19] : memref<8x32xf32, #tpu.memory_space<vmem>>, vector<1x32xf32>
    %27 = arith.addf %26, %25 : vector<1x32xf32>
    %28 = math.tanh %27 : vector<1x32xf32>
    %cst_20 = arith.constant dense<0.000000e+00> : vector<1x32xf32>
    %29 = tpu.matmul %28, %2, %cst_20 {dimension_numbers = #tpu.dot_dimension_numbers<[1], [0], [0], [1], [0, 0, 1, 1], [], []>} : vector<1x32xf32>, vector<32x32xf32>, vector<1x32xf32> -> vector<1x32xf32>
    %c4 = arith.constant 4 : index
    %c0_21 = arith.constant 0 : index
    %30 = vector.load %arg4[%c4, %c0_21] : memref<8x32xf32, #tpu.memory_space<vmem>>, vector<1x32xf32>
    %31 = arith.addf %30, %29 : vector<1x32xf32>
    %32 = math.tanh %31 : vector<1x32xf32>
    %cst_22 = arith.constant dense<0.000000e+00> : vector<1x32xf32>
    %33 = tpu.matmul %32, %2, %cst_22 {dimension_numbers = #tpu.dot_dimension_numbers<[1], [0], [0], [1], [0, 0, 1, 1], [], []>} : vector<1x32xf32>, vector<32x32xf32>, vector<1x32xf32> -> vector<1x32xf32>
    %c5 = arith.constant 5 : index
    %c0_23 = arith.constant 0 : index
    %34 = vector.load %arg4[%c5, %c0_23] : memref<8x32xf32, #tpu.memory_space<vmem>>, vector<1x32xf32>
    %35 = arith.addf %34, %33 : vector<1x32xf32>
    %36 = math.tanh %35 : vector<1x32xf32>
    %cst_24 = arith.constant dense<0.000000e+00> : vector<1x32xf32>
    %37 = tpu.matmul %36, %2, %cst_24 {dimension_numbers = #tpu.dot_dimension_numbers<[1], [0], [0], [1], [0, 0, 1, 1], [], []>} : vector<1x32xf32>, vector<32x32xf32>, vector<1x32xf32> -> vector<1x32xf32>
    %c6 = arith.constant 6 : index
    %c0_25 = arith.constant 0 : index
    %38 = vector.load %arg4[%c6, %c0_25] : memref<8x32xf32, #tpu.memory_space<vmem>>, vector<1x32xf32>
    %39 = arith.addf %38, %37 : vector<1x32xf32>
    %40 = math.tanh %39 : vector<1x32xf32>
    %cst_26 = arith.constant dense<0.000000e+00> : vector<1x32xf32>
    %41 = tpu.matmul %40, %2, %cst_26 {dimension_numbers = #tpu.dot_dimension_numbers<[1], [0], [0], [1], [0, 0, 1, 1], [], []>} : vector<1x32xf32>, vector<32x32xf32>, vector<1x32xf32> -> vector<1x32xf32>
    %c7 = arith.constant 7 : index
    %c0_27 = arith.constant 0 : index
    %42 = vector.load %arg4[%c7, %c0_27] : memref<8x32xf32, #tpu.memory_space<vmem>>, vector<1x32xf32>
    %43 = arith.addf %42, %41 : vector<1x32xf32>
    %44 = math.tanh %43 : vector<1x32xf32>
    %cst_28 = arith.constant dense<0.000000e+00> : vector<1x32xf32>
    %45 = tpu.matmul %44, %3, %cst_28 {dimension_numbers = #tpu.dot_dimension_numbers<[1], [0], [0], [1], [0, 0, 1, 1], [], []>} : vector<1x32xf32>, vector<32x32xf32>, vector<1x32xf32> -> vector<1x32xf32>
    %46 = arith.addf %45, %4 : vector<1x32xf32>
    %47 = vector.extract_strided_slice %46 {offsets = [0, 0], sizes = [1, 16], strides = [1, 1]} : vector<1x32xf32> to vector<1x16xf32>
    %c0_29 = arith.constant 0 : index
    %c0_30 = arith.constant 0 : index
    %48 = vector.load %arg3[%c0_29, %c0_30] : memref<1x16xf32, #tpu.memory_space<vmem>>, vector<1x16xf32>
    tpu.vector_store %arg3[%c0_29, %c0_30], %47 {strides = array<i32>} : memref<1x16xf32, #tpu.memory_space<vmem>>, vector<1x16xf32>,
    return
  }
}

</mosaic_0001>

<llo_original>
// kernel: tpu_custom_call.1
$region0: #{tpu_custom_call.1}
  #allocation0 [shape = 'u32[]', space=smem, size = 0x4, offset = 0x4, fixed_abs, tag = 'smem constant byte address 0x4 - core index']
  #allocation1 [shape = 'u32[72,128]{1,0:T(1,128)}', space=vmem, size = 0x9000, scoped, tag = 'internal scratch']
  #allocation2 [shape = 'f32[8,32]{1,0:T(8,128)}', space=vmem, size = 0x1000, scoped, tag = 'scratch operand']
  %s0 = inlined_call_operand.vmem [shape: f32[8,1], index: 0, kind: input, shape index: {}]
  %s1 = inlined_call_operand.vmem [shape: f32[1,32], index: 1, kind: input, shape index: {}]
  %s2 = inlined_call_operand.vmem [shape: f32[80,32], index: 2, kind: input, shape index: {}]
  %s3 = inlined_call_operand.hbm [shape: f32[1,16], index: 3, kind: output, shape index: {}]
  %s4 = sld [smem:[#allocation0]]
  $region22: #{tpu_custom_call.1} parent=0
    _
  %s6 = ssub.s32 1, %s4
  %s7 = scalar_select 0, %s6, %s4
  $region1: #{tpu_custom_call.1} parent=0
    #allocation3 [shape = 'u8[512]{0}', space=vmem, size = 0x400, scoped, tag = 'output window, operand 0, single buffered']
    #allocation4 [shape = 's32[1]{0}', space=sflag, size = 0x4, scoped, tag = 'scoped memory for tpu_custom_call.1']
    %8 = vsyncpa [#allocation4], 0
    // Predicated region
    $region2: #{tpu_custom_call.1} parent=1 // pred_check
      _
    $region3: #{tpu_custom_call.1} parent=1 // pred_check_branch
      %10 = sbr.rel (0) target = $region5
    $region4: #{tpu_custom_call.1} parent=1 // pred_region
      _
    $region5: #{tpu_custom_call.1} parent=1 // pred_fallthru
      _
    // Predicated region
    $region6: #{tpu_custom_call.1} parent=1 // pred_check
      _
    $region7: #{tpu_custom_call.1} parent=1 // pred_check_branch
      %12 = sbr.rel (0) target = $region9
    $region8: #{tpu_custom_call.1} parent=1 // pred_region
      _
    $region9: #{tpu_custom_call.1} parent=1 // pred_fallthru
      _
    // Predicated region
    $region10: #{tpu_custom_call.1} parent=1 // pred_check
      _
    $region11: #{tpu_custom_call.1} parent=1 // pred_check_branch
      %14 = sbr.rel (0) target = $region13
    $region12: #{tpu_custom_call.1} parent=1 // pred_region
      _
    $region13: #{tpu_custom_call.1} parent=1 // pred_fallthru
      _
    %v15 = vld [vmem:[%s2] sm:$0x1]
    %v16 = vld [vmem:[%s2 + $0x1] sm:$0x1]
    %v17 = vld [vmem:[%s2 + $0x8] sm:$0xff]
    %v18 = vld [vmem:[%s2 + $0x10] sm:$0xff]
    %v19 = vld [vmem:[%s2 + $0x18] sm:$0xff]
    %v20 = vld [vmem:[%s2 + $0x20] sm:$0xff]
    %v21 = vld [vmem:[%s2 + $0x28] sm:$0xff]
    %v22 = vld [vmem:[%s2 + $0x30] sm:$0xff]
    %v23 = vld [vmem:[%s2 + $0x38] sm:$0xff]
    %v24 = vld [vmem:[%s2 + $0x40] sm:$0xff]
    %v25 = vld [vmem:[%s2 + $0x48] sm:$0x1]
    %v26 = vld [vmem:[%s0] sm:$0xff]
    %28 = vset.pattern.permute.xlu0 0
    %29 = vperm.xlu0 %28, %v26
    %v30 = vpop.permute.xlu0 %29
    %v32 = vperm.slane %v15, 0
    %v33 = vmul.f32 %v30, %v32
    %v34 = vperm.slane %v16, 0
    %v35 = vadd.f32 %v33, %v34
    %vm36 = vcmask 261120
    %37 = vst.msk [vmem:[#allocation2] sm:$0xff] %vm36, %v35
    %v38 = vld [vmem:[%s1] sm:$0x1]
    %v40 = vsel %vm36, %v38, 0
    %42 = vmatpush.msra.mxu0 0.0
    %43 = vmatpush.msra.mxu0 0.0
    %44 = vmatpush.msra.mxu0 0.0
    %45 = vmatpush.msra.mxu0 0.0
    %46 = vmatpush.msra.mxu0 0.0
    %47 = vmatpush.msra.mxu0 0.0
    %48 = vmatpush.msra.mxu0 0.0
    %49 = vmatpush.msra.mxu0 0.0
    %50 = vmatpush.msra.mxu0 0.0
    %51 = vmatpush.msra.mxu0 0.0
    %52 = vmatpush.msra.mxu0 0.0
    %53 = vmatpush.msra.mxu0 0.0
    %54 = vmatpush.msra.mxu0 %v20
    %55 = vmatpush.msra.mxu0 %v19
    %56 = vmatpush.msra.mxu0 %v18
    %57 = vmatpush.msra.mxu0 %v17
    %58 = vmatmul.f32.gmra.mxu0 %v40
    %v59 = vpop.f32.mrf.mxu0
    %v60 = vadd.f32 0.0, %v59
    %61 = vdwg.mxu0
    %v62 = vld [vmem:[#allocation2] sm:$0x1]
    %v63 = vadd.f32 %v62, %v60
    %v64 = vtanh.pop %v63
    %v66 = vsel %vm36, %v64, 0
    %68 = vmatpush.msra.mxu0 0.0
    %69 = vmatpush.msra.mxu0 0.0
    %70 = vmatpush.msra.mxu0 0.0
    %71 = vmatpush.msra.mxu0 0.0
    %72 = vmatpush.msra.mxu0 0.0
    %73 = vmatpush.msra.mxu0 0.0
    %74 = vmatpush.msra.mxu0 0.0
    %75 = vmatpush.msra.mxu0 0.0
    %76 = vmatpush.msra.mxu0 0.0
    %77 = vmatpush.msra.mxu0 0.0
    %78 = vmatpush.msra.mxu0 0.0
    %79 = vmatpush.msra.mxu0 0.0
    %80 = vmatpush.msra.mxu0 %v20
    %81 = vmatpush.msra.mxu0 %v19
    %82 = vmatpush.msra.mxu0 %v18
    %83 = vmatpush.msra.mxu0 %v17
    %84 = vmatmul.f32.gmra.mxu0 %v66
    %v85 = vpop.f32.mrf.mxu0
    %v86 = vadd.f32 0.0, %v85
    %87 = vdwg.mxu0
    %v88 = vld [vmem:[#allocation2 + $0x1] sm:$0x1]
    %v89 = vadd.f32 %v88, %v86
    %v90 = vtanh.pop %v89
    %v92 = vsel %vm36, %v90, 0
    %94 = vmatpush.msra.mxu0 0.0
    %95 = vmatpush.msra.mxu0 0.0
    %96 = vmatpush.msra.mxu0 0.0
    %97 = vmatpush.msra.mxu0 0.0
    %98 = vmatpush.msra.mxu0 0.0
    %99 = vmatpush.msra.mxu0 0.0
    %100 = vmatpush.msra.mxu0 0.0
    %101 = vmatpush.msra.mxu0 0.0
    %102 = vmatpush.msra.mxu0 0.0
    %103 = vmatpush.msra.mxu0 0.0
    %104 = vmatpush.msra.mxu0 0.0
    %105 = vmatpush.msra.mxu0 0.0
    %106 = vmatpush.msra.mxu0 %v20
    %107 = vmatpush.msra.mxu0 %v19
    %108 = vmatpush.msra.mxu0 %v18
    %109 = vmatpush.msra.mxu0 %v17
    %110 = vmatmul.f32.gmra.mxu0 %v92
    %v111 = vpop.f32.mrf.mxu0
    %v112 = vadd.f32 0.0, %v111
    %113 = vdwg.mxu0
    %v114 = vld [vmem:[#allocation2 + $0x2] sm:$0x1]
    %v115 = vadd.f32 %v114, %v112
    %v116 = vtanh.pop %v115
    %v118 = vsel %vm36, %v116, 0
    %120 = vmatpush.msra.mxu0 0.0
    %121 = vmatpush.msra.mxu0 0.0
    %122 = vmatpush.msra.mxu0 0.0
    %123 = vmatpush.msra.mxu0 0.0
    %124 = vmatpush.msra.mxu0 0.0
    %125 = vmatpush.msra.mxu0 0.0
    %126 = vmatpush.msra.mxu0 0.0
    %127 = vmatpush.msra.mxu0 0.0
    %128 = vmatpush.msra.mxu0 0.0
    %129 = vmatpush.msra.mxu0 0.0
    %130 = vmatpush.msra.mxu0 0.0
    %131 = vmatpush.msra.mxu0 0.0
    %132 = vmatpush.msra.mxu0 %v20
    %133 = vmatpush.msra.mxu0 %v19
    %134 = vmatpush.msra.mxu0 %v18
    %135 = vmatpush.msra.mxu0 %v17
    %136 = vmatmul.f32.gmra.mxu0 %v118
    %v137 = vpop.f32.mrf.mxu0
    %v138 = vadd.f32 0.0, %v137
    %139 = vdwg.mxu0
    %v140 = vld [vmem:[#allocation2 + $0x3] sm:$0x1]
    %v141 = vadd.f32 %v140, %v138
    %v142 = vtanh.pop %v141
    %v144 = vsel %vm36, %v142, 0
    %146 = vmatpush.msra.mxu0 0.0
    %147 = vmatpush.msra.mxu0 0.0
    %148 = vmatpush.msra.mxu0 0.0
    %149 = vmatpush.msra.mxu0 0.0
    %150 = vmatpush.msra.mxu0 0.0
    %151 = vmatpush.msra.mxu0 0.0
    %152 = vmatpush.msra.mxu0 0.0
    %153 = vmatpush.msra.mxu0 0.0
    %154 = vmatpush.msra.mxu0 0.0
    %155 = vmatpush.msra.mxu0 0.0
    %156 = vmatpush.msra.mxu0 0.0
    %157 = vmatpush.msra.mxu0 0.0
    %158 = vmatpush.msra.mxu0 %v20
    %159 = vmatpush.msra.mxu0 %v19
    %160 = vmatpush.msra.mxu0 %v18
    %161 = vmatpush.msra.mxu0 %v17
    %162 = vmatmul.f32.gmra.mxu0 %v144
    %v163 = vpop.f32.mrf.mxu0
    %v164 = vadd.f32 0.0, %v163
    %165 = vdwg.mxu0
    %v166 = vld [vmem:[#allocation2 + $0x4] sm:$0x1]
    %v167 = vadd.f32 %v166, %v164
    %v168 = vtanh.pop %v167
    %v170 = vsel %vm36, %v168, 0
    %172 = vmatpush.msra.mxu0 0.0
    %173 = vmatpush.msra.mxu0 0.0
    %174 = vmatpush.msra.mxu0 0.0
    %175 = vmatpush.msra.mxu0 0.0
    %176 = vmatpush.msra.mxu0 0.0
    %177 = vmatpush.msra.mxu0 0.0
    %178 = vmatpush.msra.mxu0 0.0
    %179 = vmatpush.msra.mxu0 0.0
    %180 = vmatpush.msra.mxu0 0.0
    %181 = vmatpush.msra.mxu0 0.0
    %182 = vmatpush.msra.mxu0 0.0
    %183 = vmatpush.msra.mxu0 0.0
    %184 = vmatpush.msra.mxu0 %v20
    %185 = vmatpush.msra.mxu0 %v19
    %186 = vmatpush.msra.mxu0 %v18
    %187 = vmatpush.msra.mxu0 %v17
    %188 = vmatmul.f32.gmra.mxu0 %v170
    %v189 = vpop.f32.mrf.mxu0
    %v190 = vadd.f32 0.0, %v189
    %191 = vdwg.mxu0
    %v192 = vld [vmem:[#allocation2 + $0x5] sm:$0x1]
    %v193 = vadd.f32 %v192, %v190
    %v194 = vtanh.pop %v193
    %v196 = vsel %vm36, %v194, 0
    %198 = vmatpush.msra.mxu0 0.0
    %199 = vmatpush.msra.mxu0 0.0
    %200 = vmatpush.msra.mxu0 0.0
    %201 = vmatpush.msra.mxu0 0.0
    %202 = vmatpush.msra.mxu0 0.0
    %203 = vmatpush.msra.mxu0 0.0
    %204 = vmatpush.msra.mxu0 0.0
    %205 = vmatpush.msra.mxu0 0.0
    %206 = vmatpush.msra.mxu0 0.0
    %207 = vmatpush.msra.mxu0 0.0
    %208 = vmatpush.msra.mxu0 0.0
    %209 = vmatpush.msra.mxu0 0.0
    %210 = vmatpush.msra.mxu0 %v20
    %211 = vmatpush.msra.mxu0 %v19
    %212 = vmatpush.msra.mxu0 %v18
    %213 = vmatpush.msra.mxu0 %v17
    %214 = vmatmul.f32.gmra.mxu0 %v196
    %v215 = vpop.f32.mrf.mxu0
    %v216 = vadd.f32 0.0, %v215
    %217 = vdwg.mxu0
    %v218 = vld [vmem:[#allocation2 + $0x6] sm:$0x1]
    %v219 = vadd.f32 %v218, %v216
    %v220 = vtanh.pop %v219
    %v222 = vsel %vm36, %v220, 0
    %224 = vmatpush.msra.mxu0 0.0
    %225 = vmatpush.msra.mxu0 0.0
    %226 = vmatpush.msra.mxu0 0.0
    %227 = vmatpush.msra.mxu0 0.0
    %228 = vmatpush.msra.mxu0 0.0
    %229 = vmatpush.msra.mxu0 0.0
    %230 = vmatpush.msra.mxu0 0.0
    %231 = vmatpush.msra.mxu0 0.0
    %232 = vmatpush.msra.mxu0 0.0
    %233 = vmatpush.msra.mxu0 0.0
    %234 = vmatpush.msra.mxu0 0.0
    %235 = vmatpush.msra.mxu0 0.0
    %236 = vmatpush.msra.mxu0 %v20
    %237 = vmatpush.msra.mxu0 %v19
    %238 = vmatpush.msra.mxu0 %v18
    %239 = vmatpush.msra.mxu0 %v17
    %240 = vmatmul.f32.gmra.mxu0 %v222
    %v241 = vpop.f32.mrf.mxu0
    %v242 = vadd.f32 0.0, %v241
    %243 = vdwg.mxu0
    %v244 = vld [vmem:[#allocation2 + $0x7] sm:$0x1]
    %v245 = vadd.f32 %v244, %v242
    %v246 = vtanh.pop %v245
    %v248 = vsel %vm36, %v246, 0
    %250 = vmatpush.msra.mxu0 0.0
    %251 = vmatpush.msra.mxu0 0.0
    %252 = vmatpush.msra.mxu0 0.0
    %253 = vmatpush.msra.mxu0 0.0
    %254 = vmatpush.msra.mxu0 0.0
    %255 = vmatpush.msra.mxu0 0.0
    %256 = vmatpush.msra.mxu0 0.0
    %257 = vmatpush.msra.mxu0 0.0
    %258 = vmatpush.msra.mxu0 0.0
    %259 = vmatpush.msra.mxu0 0.0
    %260 = vmatpush.msra.mxu0 0.0
    %261 = vmatpush.msra.mxu0 0.0
    %262 = vmatpush.msra.mxu0 %v24
    %263 = vmatpush.msra.mxu0 %v23
    %264 = vmatpush.msra.mxu0 %v22
    %265 = vmatpush.msra.mxu0 %v21
    %266 = vmatmul.f32.gmra.mxu0 %v248
    %v267 = vpop.f32.mrf.mxu0
    %v268 = vadd.f32 %v25, %v267
    %269 = vdwg.mxu0
    %vm270 = vcmask 122880
    %271 = vst.msk [vmem:[#allocation3] sm:$0x1] %vm270, %v268
    // Predicated region
    $region14: #{tpu_custom_call.1} parent=1 // pred_check
      _
    $region15: #{tpu_custom_call.1} parent=1 // pred_check_branch
      %273 = sbr.rel (0) target = $region17
    $region16: #{tpu_custom_call.1} parent=1 // pred_region
      %275 = vsyncadd [#allocation4], 0
      %s277 = sshll.u32 [#allocation3], 4
      %s278 = int_to_ptr.vmem [resolvable:$true] %s277
      %s279 = sshll.u32 %s3, 4
      %s280 = int_to_ptr.hbm [resolvable:$true] %s279
      %282 = dma.vmem_to_hbm [thread:$0]  %s278, 16, %s280, [#allocation4]
    $region17: #{tpu_custom_call.1} parent=1 // pred_fallthru
      _
    // Predicated region
    $region18: #{tpu_custom_call.1} parent=1 // pred_check
      _
    $region19: #{tpu_custom_call.1} parent=1 // pred_check_branch
      %284 = sbr.rel (0) target = $region21
    $region20: #{tpu_custom_call.1} parent=1 // pred_region
      %286 = dma.done [#allocation4], 16
    $region21: #{tpu_custom_call.1} parent=1 // pred_fallthru
      _
    %287 = vsyncpa [#allocation4], 1

</llo_original>
